<compile_context>
chip_gen: v7x
topology: tpu7x:2x2x1
jax: 0.10.0
libtpu: 0.0.40
codegen_flags: <defaults>
</compile_context>

<pallas_src>
import functools

import jax
import jax.numpy as jnp
from jax.experimental import pallas as pl
from jax.experimental.pallas import tpu as pltpu


def _focal_loss_kernel(logits_ref, tgt_ref, out_ref, *, alpha, gamma,
                       n_rows, mask_rows):
    # logits_ref: (TM, C) native dtype in VMEM
    # tgt_ref:    (TM, 1) int32 in VMEM
    # out_ref:    (1, 1, 1) f32 in VMEM -- partial sum of focal loss over tile
    i = pl.program_id(0)
    x = logits_ref[...].astype(jnp.float32)                      # (TM, C)
    t = tgt_ref[...]                                             # (TM, 1)
    tm, c = x.shape

    # numerically stable log-sum-exp over classes
    mx = jnp.max(x, axis=-1, keepdims=True)                      # (TM, 1)
    lse = jnp.log(jnp.sum(jnp.exp(x - mx), axis=-1, keepdims=True))

    # gather target logit straight from x (no one-hot materialization,
    # and the shifted z never needs to stay live for the select)
    cls = jax.lax.broadcasted_iota(jnp.int32, (tm, c), 1)        # (TM, C)
    x_tgt = jnp.sum(jnp.where(cls == t, x, jnp.float32(0.0)),
                    axis=-1, keepdims=True)                      # (TM, 1)

    # per-sample cross-entropy, clamped so rounding can never make pt > 1
    ce = jnp.maximum(mx + lse - x_tgt, 0.0)                      # (TM, 1)
    pt = jnp.exp(-ce)
    u = 1.0 - pt                                                 # in [0, 1)

    g = float(gamma)
    if g == 2.0:
        w = u * u                                                # single VALU mul
    elif g == int(g) and int(g) >= 0:
        # exponentiation by squaring -> few VALU multiplies, no EUP pow
        w = jnp.ones_like(u)
        base, k = u, int(g)
        while k:
            if k & 1:
                w = w * base
            k >>= 1
            if k:
                base = base * base
    else:
        w = jnp.maximum(u, 0.0) ** g

    focal = jnp.float32(alpha) * w * ce                          # (TM, 1)

    if mask_rows:
        # last tile is padded past N: zero the garbage rows before reducing
        row = jax.lax.broadcasted_iota(jnp.int32, (tm, 1), 0) + i * tm
        focal = jnp.where(row < n_rows, focal, jnp.float32(0.0))

    out_ref[...] = jnp.sum(focal).reshape(1, 1, 1)


def _choose_tm(n, c, logits_dtype):
    itemsize = jnp.dtype(logits_dtype).itemsize
    # second-minor block dim must be a multiple of the dtype's sublane packing
    # (8 for 4-byte, 16 for 2-byte, 32 for 1-byte) unless it equals the full dim
    sublane = {4: 8, 2: 16, 1: 32}.get(itemsize, 8)

    lane_c = ((c + 127) // 128) * 128        # VMEM pads the minor dim to 128 lanes
    # Per-row VMEM bytes:
    #   2x double-buffered logits tile (native dtype, lane-padded)
    #   2x double-buffered int32 target tile (lane-padded to 128)
    #   ~3x lane-padded f32 temporaries (widened x, exp(x-mx), one-hot select)
    per_row = 2 * lane_c * itemsize + 2 * 128 * 4 + 3 * lane_c * 4
    budget = 24 * 1024 * 1024                # headroom under the 32 MiB scoped
                                             # default; safe on v7x (64 MiB VMEM)
    tm = budget // per_row
    tm = min(tm, 32768)                      # multi-MiB per step is plenty to
                                             # amortize the ~0.35us step overhead

    # keep >= 2 grid steps when the batch allows it, so both v7x TensorCores
    # get work under dimension_semantics=("parallel",)
    if n >= 2 * sublane:
        half = -(-n // 2)
        half = -(-half // sublane) * sublane
        tm = min(tm, half)

    if tm >= n:
        return n                             # full-dim block: always legal
    return max(sublane, (tm // sublane) * sublane)


def focal_loss(logits, targets, alpha=1.0, gamma=2.0):
    """logits: (N, C) float (any float dtype); targets: (N,) int class indices.

    Returns the scalar mean focal loss, matching the PyTorch FocalLoss module
    (uniform scalar alpha, not the per-class alpha_t variant).
    """
    n, c = logits.shape
    itemsize = jnp.dtype(logits.dtype).itemsize
    tm = _choose_tm(n, c, logits.dtype)
    num_tiles = pl.cdiv(n, tm)
    mask_rows = (n % tm) != 0

    tgt2d = targets.astype(jnp.int32).reshape(n, 1)

    cost = pl.CostEstimate(
        flops=6 * n * c,
        transcendentals=n * (c + 2),
        bytes_accessed=n * c * itemsize + n * 4 + num_tiles * 4,
    )

    partial = pl.pallas_call(
        functools.partial(_focal_loss_kernel,
                          alpha=float(alpha), gamma=float(gamma),
                          n_rows=n, mask_rows=mask_rows),
        grid=(num_tiles,),
        in_specs=[
            pl.BlockSpec((tm, c), lambda i: (i, 0)),   # logits tile
            pl.BlockSpec((tm, 1), lambda i: (i, 0)),   # target indices tile
        ],
        # one scalar per grid step; last two block dims equal the full array
        # dims so the layout is always legal, and each step's block is disjoint
        out_specs=pl.BlockSpec((1, 1, 1), lambda i: (i, 0, 0)),
        out_shape=jax.ShapeDtypeStruct((num_tiles, 1, 1), jnp.float32),
        compiler_params=pltpu.CompilerParams(
            dimension_semantics=("parallel",),         # disjoint outputs
            vmem_limit_bytes=32 * 1024 * 1024,
        ),
        cost_estimate=cost,
    )(logits, tgt2d)

    # tiny finalize outside the kernel: sum num_tiles partials, divide by N
    return jnp.sum(partial) / jnp.float32(n)


def _reference_focal_loss(logits, targets, alpha=1.0, gamma=2.0):
    logp = jax.nn.log_softmax(logits.astype(jnp.float32), axis=-1)
    ce = -jnp.take_along_axis(logp, targets[:, None].astype(jnp.int32), axis=-1)[:, 0]
    pt = jnp.exp(-ce)
    return jnp.mean(alpha * (1.0 - pt) ** gamma * ce)


if __name__ == "__main__":
    key = jax.random.PRNGKey(0)

    # Case 1: the module's nominal small shape (single tile, f32).
    k1, k2, k3, k4, k5, k6 = jax.random.split(key, 6)
    N, C = 8, 32
    logits = jax.random.normal(k1, (N, C), dtype=jnp.float32)
    targets = jax.random.randint(k2, (N,), 0, C, dtype=jnp.int32)
    loss = jax.block_until_ready(focal_loss(logits, targets, alpha=1.0, gamma=2.0))
    ref = _reference_focal_loss(logits, targets, alpha=1.0, gamma=2.0)
    assert jnp.allclose(loss, ref, rtol=1e-5, atol=1e-5), (loss, ref)

    # Case 2: N not a multiple of TM (exercises 2 grid steps + last-tile mask).
    N2, C2 = 20, 32
    logits2 = jax.random.normal(k3, (N2, C2), dtype=jnp.float32)
    targets2 = jax.random.randint(k4, (N2,), 0, C2, dtype=jnp.int32)
    loss2 = jax.block_until_ready(focal_loss(logits2, targets2))
    ref2 = _reference_focal_loss(logits2, targets2)
    assert jnp.allclose(loss2, ref2, rtol=1e-5, atol=1e-5), (loss2, ref2)

    # Case 3: bf16 logits (exercises the 16-sublane alignment path + masking).
    N3, C3 = 48, 32
    logits3 = jax.random.normal(k5, (N3, C3), dtype=jnp.bfloat16)
    targets3 = jax.random.randint(k6, (N3,), 0, C3, dtype=jnp.int32)
    loss3 = jax.block_until_ready(focal_loss(logits3, targets3))
    ref3 = _reference_focal_loss(logits3, targets3)
    assert jnp.allclose(loss3, ref3, rtol=1e-5, atol=1e-5), (loss3, ref3)

    print("KERNEL_OK")
</pallas_src>

<mosaic_0001>
module attributes {stable_mosaic.version = 11 : i64} {
  func.func @_focal_loss_kernel(%arg0: i32, %arg1: memref<8x32xf32, #tpu.memory_space<vmem>>, %arg2: memref<8x1xi32, #tpu.memory_space<vmem>>, %arg3: memref<1x1x1xf32, #tpu.memory_space<vmem>>) attributes {dimension_semantics = [#tpu.dimension_semantics<parallel>], iteration_bounds = array<i64: 1>, scalar_prefetch = 0 : i64, scratch_operands = 0 : i64, tpu.core_type = #tpu.core_type<tc>, window_params = [{transform_indices = @transform_0, window_bounds = array<i64: 8, 32>}, {transform_indices = @transform_1, window_bounds = array<i64: 8, 1>}, {transform_indices = @transform_2, window_bounds = array<i64: 1, 1, 1>}]} {
    %c0 = arith.constant 0 : index
    %c0_0 = arith.constant 0 : index
    %0 = vector.load %arg1[%c0, %c0_0] : memref<8x32xf32, #tpu.memory_space<vmem>>, vector<8x32xf32>
    %c0_1 = arith.constant 0 : index
    %c0_2 = arith.constant 0 : index
    %1 = vector.load %arg2[%c0_1, %c0_2] : memref<8x1xi32, #tpu.memory_space<vmem>>, vector<8x1xi32>
    %cst = arith.constant dense<0xFF800000> : vector<8xf32>
    %2 = vector.multi_reduction <maximumf>, %0, %cst [1] : vector<8x32xf32> to vector<8xf32>
    %3 = vector.shape_cast %2 : vector<8xf32> to vector<8x1xf32>
    %4 = vector.broadcast %3 : vector<8x1xf32> to vector<8x32xf32>
    %5 = arith.subf %0, %4 : vector<8x32xf32>
    %6 = math.exp %5 : vector<8x32xf32>
    %cst_3 = arith.constant dense<0.000000e+00> : vector<8xf32>
    %7 = vector.multi_reduction <add>, %6, %cst_3 [1] : vector<8x32xf32> to vector<8xf32>
    %8 = vector.shape_cast %7 : vector<8xf32> to vector<8x1xf32>
    %9 = math.log %8 : vector<8x1xf32>
    %10 = tpu.iota {dimensions = array<i32: 1>} : vector<8x32xi32>
    %11 = vector.broadcast %1 : vector<8x1xi32> to vector<8x32xi32>
    %12 = arith.cmpi eq, %10, %11 : vector<8x32xi32>
    %cst_4 = arith.constant 0.000000e+00 : f32
    %13 = vector.broadcast %cst_4 : f32 to vector<8x32xf32>
    %14 = arith.select %12, %0, %13 : vector<8x32xi1>, vector<8x32xf32>
    %cst_5 = arith.constant dense<0.000000e+00> : vector<8xf32>
    %15 = vector.multi_reduction <add>, %14, %cst_5 [1] : vector<8x32xf32> to vector<8xf32>
    %16 = vector.shape_cast %15 : vector<8xf32> to vector<8x1xf32>
    %17 = arith.addf %3, %9 : vector<8x1xf32>
    %18 = arith.subf %17, %16 : vector<8x1xf32>
    %cst_6 = arith.constant 0.000000e+00 : f32
    %19 = vector.broadcast %cst_6 : f32 to vector<8x1xf32>
    %20 = arith.maximumf %18, %19 : vector<8x1xf32>
    %cst_7 = arith.constant 0.000000e+00 : f32
    %21 = vector.broadcast %cst_7 : f32 to vector<8x1xf32>
    %22 = arith.subf %21, %20 : vector<8x1xf32>
    %23 = math.exp %22 : vector<8x1xf32>
    %cst_8 = arith.constant 1.000000e+00 : f32
    %24 = vector.broadcast %cst_8 : f32 to vector<8x1xf32>
    %25 = arith.subf %24, %23 : vector<8x1xf32>
    %26 = arith.mulf %25, %25 : vector<8x1xf32>
    %cst_9 = arith.constant 1.000000e+00 : f32
    %27 = vector.broadcast %cst_9 : f32 to vector<8x1xf32>
    %28 = arith.mulf %27, %26 : vector<8x1xf32>
    %29 = arith.mulf %28, %20 : vector<8x1xf32>
    %30 = vector.shape_cast %29 : vector<8x1xf32> to vector<1x8x1xf32>
    %cst_10 = arith.constant dense<0.000000e+00> : vector<1xf32>
    %31 = vector.multi_reduction <add>, %30, %cst_10 [1, 2] : vector<1x8x1xf32> to vector<1xf32>
    %32 = vector.shape_cast %31 : vector<1xf32> to vector<1x1x1xf32>
    %33 = vector.extract %32[0, 0, 0] : f32 from vector<1x1x1xf32>
    %34 = vector.broadcast %33 : f32 to vector<1x1x1xf32>
    %c0_11 = arith.constant 0 : index
    %c0_12 = arith.constant 0 : index
    %c0_13 = arith.constant 0 : index
    %35 = vector.load %arg3[%c0_11, %c0_12, %c0_13] : memref<1x1x1xf32, #tpu.memory_space<vmem>>, vector<1x1x1xf32>
    tpu.vector_store %arg3[%c0_11, %c0_12, %c0_13], %34 {strides = array<i32>} : memref<1x1x1xf32, #tpu.memory_space<vmem>>, vector<1x1x1xf32>,
    return
  }
  func.func @transform_0(%arg0: i32) -> (i32, i32) {
    %c0_i32 = arith.constant 0 : i32
    %c0_i32_0 = arith.constant 0 : i32
    return %arg0, %c0_i32 : i32, i32
  }
  func.func @transform_1(%arg0: i32) -> (i32, i32) {
    %c0_i32 = arith.constant 0 : i32
    %c0_i32_0 = arith.constant 0 : i32
    return %arg0, %c0_i32 : i32, i32
  }
  func.func @transform_2(%arg0: i32) -> (i32, i32, i32) {
    %c0_i32 = arith.constant 0 : i32
    %c0_i32_0 = arith.constant 0 : i32
    %c0_i32_1 = arith.constant 0 : i32
    return %arg0, %c0_i32, %c0_i32_0 : i32, i32, i32
  }
}

</mosaic_0001>

<llo_original>
// kernel: tpu_custom_call.1
$region0: #{tpu_custom_call.1}
  #allocation0 [shape = 'u32[]', space=smem, size = 0x4, offset = 0x4, fixed_abs, tag = 'smem constant byte address 0x4 - core index']
  #allocation1 [shape = 'u32[144,128]{1,0:T(1,128)}', space=vmem, size = 0x12000, scoped, tag = 'internal scratch']
  %s0 = inlined_call_operand.vmem [shape: f32[8,32], index: 0, kind: input, shape index: {}]
  %s1 = inlined_call_operand.vmem [shape: s32[8,1], index: 1, kind: input, shape index: {}]
  %s2 = inlined_call_operand.hbm [shape: f32[1,1,1], index: 2, kind: output, shape index: {}]
  %s3 = sld [smem:[#allocation0]]
  $region18: #{tpu_custom_call.1} parent=0
    _
  %s5 = ssub.s32 1, %s3
  %s6 = scalar_select 0, %s5, %s3
  $region1: #{tpu_custom_call.1} parent=0
    #allocation2 [shape = 'u8[512]{0}', space=vmem, size = 0x400, scoped, tag = 'output window, operand 0, single buffered']
    #allocation3 [shape = 's32[1]{0}', space=sflag, size = 0x4, scoped, tag = 'scoped memory for tpu_custom_call.1']
    %7 = vsyncpa [#allocation3], 0
    // Predicated region
    $region2: #{tpu_custom_call.1} parent=1 // pred_check
      _
    $region3: #{tpu_custom_call.1} parent=1 // pred_check_branch
      %9 = sbr.rel (0) target = $region5
    $region4: #{tpu_custom_call.1} parent=1 // pred_region
      _
    $region5: #{tpu_custom_call.1} parent=1 // pred_fallthru
      _
    // Predicated region
    $region6: #{tpu_custom_call.1} parent=1 // pred_check
      _
    $region7: #{tpu_custom_call.1} parent=1 // pred_check_branch
      %11 = sbr.rel (0) target = $region9
    $region8: #{tpu_custom_call.1} parent=1 // pred_region
      _
    $region9: #{tpu_custom_call.1} parent=1 // pred_fallthru
      _
    %v12 = vld [vmem:[%s0] sm:$0xff]
    %v13 = vld [vmem:[%s1] sm:$0xff]
    %vm14 = vcmask 261120
    %v15 = vsel %vm14, %v12, -inf
    %16 = vmax.xlane.f32.xlu0 %v15
    %v17 = vpop.xlane.xlu0 %16
    %v18 = vsub.f32 %v12, %v17
    %v19 = vmul.f32 %v18, 1.442695
    %v20 = vpow.pop %v19
    %v21 = vsel %vm14, %v20, 0.0
    %22 = vadd.xlane.f32.xlu0 %v21
    %v23 = vpop.xlane.xlu0 %22
    %v24 = vlog2.pop %v23
    %v25 = vmul.f32 %v24, 0.6931472
    %v26 = vlaneseq
    %v27 = vand.u32 %v26, 127
    %28 = vset.pattern.permute.xlu0 0
    %29 = vperm.xlu0 %28, %v13
    %v30 = vpop.permute.xlu0 %29
    %vm31 = vcmp.eq.s32.totalorder %v27, %v30
    %v32 = vsel %vm31, %v12, 0.0
    %v33 = vsel %vm14, %v32, 0.0
    %34 = vadd.xlane.f32.xlu0 %v33
    %v35 = vpop.xlane.xlu0 %34
    %v36 = vadd.f32 %v17, %v25
    %v37 = vsub.f32 %v36, %v35
    %v38 = vmax.f32 %v37, 0.0
    %v39 = vsub.f32 0.0, %v38
    %v40 = vmul.f32 %v39, 1.442695
    %v41 = vpow.pop %v40
    %v42 = vsub.f32 1.0, %v41
    %v43 = vmul.f32 %v42, %v42
    %v44 = vmul.f32 %v43, %v38
    %vm45 = vcmask 7168
    %v46 = vsel %vm45, %v44, 0.0
    %47 = vadd.xlane.f32.xlu0 %v46
    %v48 = vpop.xlane.xlu0 %47
    %v49 = vrot.slane %v48, 4
    %v50 = vadd.f32 %v48, %v49
    %v51 = vrot.slane %v50, 2
    %v52 = vadd.f32 %v50, %v51
    %v53 = vrot.slane %v52, 1
    %v54 = vadd.f32 %v52, %v53
    %s55 = vtos %v54
    %v56 = vstv %s55
    %vm57 = vcmask 0
    %58 = vst.msk [vmem:[#allocation2] sm:$0x1] %vm57, %v56
    // Predicated region
    $region10: #{tpu_custom_call.1} parent=1 // pred_check
      _
    $region11: #{tpu_custom_call.1} parent=1 // pred_check_branch
      %60 = sbr.rel (0) target = $region13
    $region12: #{tpu_custom_call.1} parent=1 // pred_region
      %s62 = ssub.s32 16, 16
      %63 = vsyncadd [#allocation3], %s62
      %s65 = sshll.u32 [#allocation2], 4
      %s66 = int_to_ptr.vmem [resolvable:$true] %s65
      %68 = dma.vmem_to_hbm [thread:$0]  %s66, 16, %s2, [#allocation3]
    $region13: #{tpu_custom_call.1} parent=1 // pred_fallthru
      _
    // Predicated region
    $region14: #{tpu_custom_call.1} parent=1 // pred_check
      _
    $region15: #{tpu_custom_call.1} parent=1 // pred_check_branch
      %70 = sbr.rel (0) target = $region17
    $region16: #{tpu_custom_call.1} parent=1 // pred_region
      %71 = dma.done [#allocation3], 16
    $region17: #{tpu_custom_call.1} parent=1 // pred_fallthru
      _
    %72 = vsyncpa [#allocation3], 1

</llo_original>
